<compile_context>
chip_gen: v6e
topology: v6e:2x2x1
jax: 0.10.0
libtpu: 0.0.40
codegen_flags: <defaults>
</compile_context>

<pallas_src>
import functools

import jax
import jax.numpy as jnp
from jax.experimental import pallas as pl
from jax.experimental.pallas import tpu as pltpu


def _tversky_kernel(p_ref, t_ref, out_ref, acc_pt, acc_lin, *,
                    alpha, beta, epsilon, rem, chunk):
    """grid = (row_blocks, spatial_tiles); axis 1 is the reduction axis."""
    k = pl.program_id(1)
    nk = pl.num_programs(1)
    rows = acc_pt.shape[0]
    tile_s = p_ref.shape[1]
    same_ab = (alpha == beta)

    @pl.when(k == 0)
    def _init():
        acc_pt[...] = jnp.zeros_like(acc_pt)
        acc_lin[...] = jnp.zeros_like(acc_lin)

    def accumulate(valid_cols):
        # Static chunk loop: bounded temporaries, per-row partials folded per chunk,
        # a single += into each scratch accumulator per grid step.
        pt_part = jnp.zeros((rows, 1), jnp.float32)
        lin_part = jnp.zeros((rows, 1), jnp.float32)
        start = 0
        while start < valid_cols:
            w = min(chunk, valid_cols - start)
            p = p_ref[:, start:start + w].astype(jnp.float32)
            t = t_ref[:, start:start + w].astype(jnp.float32)
            pt_part = pt_part + jnp.sum(p * t, axis=-1, keepdims=True)
            lin = (p + t) if same_ab else (alpha * p + beta * t)
            lin_part = lin_part + jnp.sum(lin, axis=-1, keepdims=True)
            start += w
        acc_pt[...] += pt_part
        acc_lin[...] += lin_part

    if rem:
        # Ragged last spatial tile: hot path stays mask-free; the last tile only
        # touches its `rem` valid columns via static slices (no iota / select).
        @pl.when(k != nk - 1)
        def _full_tile():
            accumulate(tile_s)

        @pl.when(k == nk - 1)
        def _ragged_tile():
            accumulate(rem)
    else:
        accumulate(tile_s)

    @pl.when(k == nk - 1)
    def _finalize():
        tp = acc_pt[...]
        lin = acc_lin[...]
        if same_ab:
            lin = lin * alpha          # accumulated sum(p + t) -> alpha*sum(p) + beta*sum(t)
        denom = (1.0 - alpha - beta) * tp + lin + epsilon
        out_ref[...] = (tp + epsilon) / denom


def _sublane_quantum(dtype):
    itemsize = jnp.dtype(dtype).itemsize
    if itemsize >= 4:
        return 8
    return (4 // itemsize) * 8            # bf16 -> 16, int8/fp8 -> 32


def _pick_row_tile(nc, quantum, cap=256, want_blocks=2):
    """Row block: a multiple of the sublane quantum (or the full extent), capped,
    and small enough to give >= want_blocks blocks when possible (v7x megacore).
    Non-dividing row blocks are fine: the last block is ragged and its garbage
    rows are never written back."""
    if nc <= quantum:
        return nc
    cap = max(quantum, (cap // quantum) * quantum)
    target = -(-nc // want_blocks)                    # ceil(nc / want_blocks)
    rt = -(-target // quantum) * quantum              # round up to quantum
    rt = min(rt, cap)
    if rt >= nc:
        return nc
    return rt


def _vmem_capacity_bytes(default=64 * 1024 * 1024):
    """Per-core VMEM capacity; conservative (v7x-safe) fallback if the query fails."""
    try:
        info = pltpu.get_tpu_info()
        cap = getattr(info, "vmem_capacity_bytes", None)
        cap = int(cap) if cap else 0
        if cap > 0:
            return cap
    except Exception:
        pass
    return default


def tversky_loss(y_pred, y_true, *, alpha=0.5, beta=0.5, epsilon=1e-6,
                 spatial_tile=16384, row_cap=256):
    """Pallas implementation of TverskyLoss.forward for NCDHW inputs."""
    assert y_pred.shape == y_true.shape and y_pred.ndim == 5
    n, c, d, h, w = y_pred.shape
    nc = n * c
    s = d * h * w

    # Collapse to [N*C, D*H*W]; contiguous-dim collapse only, no pad, no cast.
    p2 = y_pred.reshape(nc, s)
    t2 = y_true.reshape(nc, s)

    ip = jnp.dtype(p2.dtype).itemsize
    it = jnp.dtype(t2.dtype).itemsize
    quantum = max(_sublane_quantum(p2.dtype), _sublane_quantum(t2.dtype))
    row_tile = _pick_row_tile(nc, quantum, cap=row_cap)
    grid_rows = pl.cdiv(nc, row_tile)

    # Per-generation VMEM sizing: big on v5e/v6e (128 MiB), conservative on v7x (64 MiB).
    cap_bytes = _vmem_capacity_bytes()
    budget = max(16 << 20, min(64 << 20, int(cap_bytes * 0.45)))
    vmem_limit = max(32 << 20, min(100 << 20, int(cap_bytes * 0.7)))

    # In-kernel chunk width (multiple of 128). Temporaries are bounded by the chunk.
    chunk = max(128, min(512, (int(spatial_tile) // 128) * 128))
    bytes_per_col = 2 * (ip + it) * row_tile                 # double-buffered inputs
    reserve = 6 * row_tile * chunk * 4 + (1 << 20)           # chunk temporaries + slack
    max_cols = max(chunk, (budget - reserve) // bytes_per_col)
    tile_cap = max(chunk, (min(int(spatial_tile), int(max_cols)) // chunk) * chunk)

    if s <= tile_cap:
        tile_s, num_k, rem = s, 1, 0                         # single full-extent tile
    else:
        tile_s = tile_cap
        # Prefer a divisor of s so the ragged-tile branch disappears entirely.
        for cand in range(tile_cap, tile_cap // 2 - 1, -chunk):
            if cand >= chunk and s % cand == 0:
                tile_s = cand
                break
        num_k = pl.cdiv(s, tile_s)
        rem = s % tile_s

    grid = (grid_rows, num_k)
    kernel = functools.partial(_tversky_kernel, alpha=float(alpha), beta=float(beta),
                               epsilon=float(epsilon), rem=int(rem), chunk=int(chunk))

    cost = pl.CostEstimate(flops=int(3 * nc * s), transcendentals=0,
                           bytes_accessed=int(nc * s * (ip + it) + nc * 4))

    per_row = pl.pallas_call(
        kernel,
        out_shape=jax.ShapeDtypeStruct((nc, 1), jnp.float32),
        grid_spec=pltpu.PrefetchScalarGridSpec(
            num_scalar_prefetch=0,
            grid=grid,
            in_specs=[
                pl.BlockSpec((row_tile, tile_s), lambda r, k: (r, k)),
                pl.BlockSpec((row_tile, tile_s), lambda r, k: (r, k)),
            ],
            out_specs=pl.BlockSpec((row_tile, 1), lambda r, k: (r, 0)),
            scratch_shapes=[
                pltpu.VMEM((row_tile, 1), jnp.float32),      # sum(p * t) per row
                pltpu.VMEM((row_tile, 1), jnp.float32),      # alpha*sum(p)+beta*sum(t)
            ],
        ),
        compiler_params=pltpu.CompilerParams(
            dimension_semantics=("parallel", "arbitrary"),
            vmem_limit_bytes=int(vmem_limit)),
        cost_estimate=cost,
    )(p2, t2)

    tversky = jnp.mean(per_row[:, 0])
    return (1.0 - tversky).astype(jnp.float32)


def _tversky_loss_ref(y_pred, y_true, alpha=0.5, beta=0.5, epsilon=1e-6):
    y_pred = y_pred.astype(jnp.float32)
    y_true = y_true.astype(jnp.float32)
    tp = jnp.sum(y_pred * y_true, axis=(2, 3, 4))
    fp = jnp.sum((1 - y_true) * y_pred, axis=(2, 3, 4))
    fn = jnp.sum(y_true * (1 - y_pred), axis=(2, 3, 4))
    tv = (tp + epsilon) / (tp + alpha * fp + beta * fn + epsilon)
    return 1.0 - jnp.mean(tv)


if __name__ == "__main__":
    key = jax.random.PRNGKey(0)
    k1, k2 = jax.random.split(key)

    # Test 1: small NCDHW input, single full-extent spatial tile (default Dice).
    shape = (2, 4, 4, 8, 8)
    y_pred = jax.nn.sigmoid(jax.random.normal(k1, shape, dtype=jnp.float32))
    y_true = (jax.random.uniform(k2, shape) > 0.5).astype(jnp.float32)
    out = jax.block_until_ready(tversky_loss(y_pred, y_true))
    ref = jax.block_until_ready(_tversky_loss_ref(y_pred, y_true))
    assert jnp.allclose(out, ref, atol=1e-5, rtol=1e-5), (out, ref)

    # Test 2: spatial size not a multiple of the tile -> ragged last spatial tile
    # (pl.when-gated static-slice path), alpha != beta.
    shape2 = (2, 4, 3, 7, 9)                      # s = 189
    y_pred2 = jax.nn.sigmoid(jax.random.normal(k1, shape2, dtype=jnp.float32))
    y_true2 = (jax.random.uniform(k2, shape2) > 0.5).astype(jnp.float32)
    out2 = jax.block_until_ready(
        tversky_loss(y_pred2, y_true2, alpha=0.3, beta=0.7, spatial_tile=128))
    ref2 = jax.block_until_ready(
        _tversky_loss_ref(y_pred2, y_true2, alpha=0.3, beta=0.7))
    assert jnp.allclose(out2, ref2, atol=1e-5, rtol=1e-5), (out2, ref2)

    # Test 3: multi-tile reduction (exact-divisor tile, rem == 0), >= 2 row blocks on
    # the "parallel" axis, and a ragged last row block (nc = 12 with row_tile = 8).
    shape3 = (3, 4, 8, 16, 16)                    # nc = 12, s = 2048
    y_pred3 = jax.nn.sigmoid(jax.random.normal(k1, shape3, dtype=jnp.float32))
    y_true3 = (jax.random.uniform(k2, shape3) > 0.5).astype(jnp.float32)
    out3 = jax.block_until_ready(
        tversky_loss(y_pred3, y_true3, alpha=0.4, beta=0.6, spatial_tile=1024))
    ref3 = jax.block_until_ready(
        _tversky_loss_ref(y_pred3, y_true3, alpha=0.4, beta=0.6))
    assert jnp.allclose(out3, ref3, atol=1e-5, rtol=1e-5), (out3, ref3)

    # Test 4: bf16 inputs stream in their native dtype (no wrapper up-cast).
    y_pred4 = y_pred.astype(jnp.bfloat16)
    y_true4 = y_true.astype(jnp.bfloat16)
    out4 = jax.block_until_ready(tversky_loss(y_pred4, y_true4))
    ref4 = jax.block_until_ready(_tversky_loss_ref(y_pred4, y_true4))
    assert jnp.allclose(out4, ref4, atol=1e-4, rtol=1e-4), (out4, ref4)

    print("KERNEL_OK")
</pallas_src>

<mosaic_0001>
module attributes {stable_mosaic.version = 11 : i64} {
  func.func @_tversky_kernel(%arg0: i32, %arg1: i32, %arg2: memref<8x256xf32, #tpu.memory_space<vmem>>, %arg3: memref<8x256xf32, #tpu.memory_space<vmem>>, %arg4: memref<8x1xf32, #tpu.memory_space<vmem>>, %arg5: memref<8x1xf32, #tpu.memory_space<vmem>>, %arg6: memref<8x1xf32, #tpu.memory_space<vmem>>) attributes {dimension_semantics = [#tpu.dimension_semantics<parallel>, #tpu.dimension_semantics<arbitrary>], iteration_bounds = array<i64: 1, 1>, scalar_prefetch = 0 : i64, scratch_operands = 2 : i64, tpu.core_type = #tpu.core_type<tc>, window_params = [{transform_indices = @transform_0, window_bounds = array<i64: 8, 256>}, {transform_indices = @transform_1, window_bounds = array<i64: 8, 256>}, {transform_indices = @transform_2, window_bounds = array<i64: 8, 1>}]} {
    %c0_i32 = arith.constant 0 : i32
    %0 = arith.cmpi eq, %arg1, %c0_i32 : i32
    %1 = arith.extui %0 : i1 to i32
    %c0_i32_0 = arith.constant 0 : i32
    %2 = arith.cmpi ne, %1, %c0_i32_0 : i32
    scf.if %2 {
      %cst_17 = arith.constant 0.000000e+00 : f32
      %24 = vector.broadcast %cst_17 : f32 to vector<8x1xf32>
      %c0_18 = arith.constant 0 : index
      %c0_19 = arith.constant 0 : index
      %25 = vector.load %arg5[%c0_18, %c0_19] : memref<8x1xf32, #tpu.memory_space<vmem>>, vector<8x1xf32>
      tpu.vector_store %arg5[%c0_18, %c0_19], %24 {strides = array<i32>} : memref<8x1xf32, #tpu.memory_space<vmem>>, vector<8x1xf32>,
      %cst_20 = arith.constant 0.000000e+00 : f32
      %26 = vector.broadcast %cst_20 : f32 to vector<8x1xf32>
      %c0_21 = arith.constant 0 : index
      %c0_22 = arith.constant 0 : index
      %27 = vector.load %arg6[%c0_21, %c0_22] : memref<8x1xf32, #tpu.memory_space<vmem>>, vector<8x1xf32>
      tpu.vector_store %arg6[%c0_21, %c0_22], %26 {strides = array<i32>} : memref<8x1xf32, #tpu.memory_space<vmem>>, vector<8x1xf32>,
    } else {
    }
    %cst = arith.constant 0.000000e+00 : f32
    %3 = vector.broadcast %cst : f32 to vector<8x1xf32>
    %cst_1 = arith.constant 0.000000e+00 : f32
    %4 = vector.broadcast %cst_1 : f32 to vector<8x1xf32>
    %c0 = arith.constant 0 : index
    %c0_2 = arith.constant 0 : index
    %5 = vector.load %arg2[%c0, %c0_2] : memref<8x256xf32, #tpu.memory_space<vmem>>, vector<8x256xf32>
    %c0_3 = arith.constant 0 : index
    %c0_4 = arith.constant 0 : index
    %6 = vector.load %arg3[%c0_3, %c0_4] : memref<8x256xf32, #tpu.memory_space<vmem>>, vector<8x256xf32>
    %7 = arith.mulf %5, %6 : vector<8x256xf32>
    %cst_5 = arith.constant dense<0.000000e+00> : vector<8xf32>
    %8 = vector.multi_reduction <add>, %7, %cst_5 [1] : vector<8x256xf32> to vector<8xf32>
    %9 = vector.shape_cast %8 : vector<8xf32> to vector<8x1xf32>
    %10 = arith.addf %3, %9 : vector<8x1xf32>
    %11 = arith.addf %5, %6 : vector<8x256xf32>
    %cst_6 = arith.constant dense<0.000000e+00> : vector<8xf32>
    %12 = vector.multi_reduction <add>, %11, %cst_6 [1] : vector<8x256xf32> to vector<8xf32>
    %13 = vector.shape_cast %12 : vector<8xf32> to vector<8x1xf32>
    %14 = arith.addf %4, %13 : vector<8x1xf32>
    %c0_7 = arith.constant 0 : index
    %c0_8 = arith.constant 0 : index
    %15 = vector.load %arg5[%c0_7, %c0_8] : memref<8x1xf32, #tpu.memory_space<vmem>>, vector<8x1xf32>
    %16 = arith.addf %15, %10 : vector<8x1xf32>
    %c0_9 = arith.constant 0 : index
    %c0_10 = arith.constant 0 : index
    %17 = vector.load %arg5[%c0_9, %c0_10] : memref<8x1xf32, #tpu.memory_space<vmem>>, vector<8x1xf32>
    tpu.vector_store %arg5[%c0_9, %c0_10], %16 {strides = array<i32>} : memref<8x1xf32, #tpu.memory_space<vmem>>, vector<8x1xf32>,
    %c0_11 = arith.constant 0 : index
    %c0_12 = arith.constant 0 : index
    %18 = vector.load %arg6[%c0_11, %c0_12] : memref<8x1xf32, #tpu.memory_space<vmem>>, vector<8x1xf32>
    %19 = arith.addf %18, %14 : vector<8x1xf32>
    %c0_13 = arith.constant 0 : index
    %c0_14 = arith.constant 0 : index
    %20 = vector.load %arg6[%c0_13, %c0_14] : memref<8x1xf32, #tpu.memory_space<vmem>>, vector<8x1xf32>
    tpu.vector_store %arg6[%c0_13, %c0_14], %19 {strides = array<i32>} : memref<8x1xf32, #tpu.memory_space<vmem>>, vector<8x1xf32>,
    %c0_i32_15 = arith.constant 0 : i32
    %21 = arith.cmpi eq, %arg1, %c0_i32_15 : i32
    %22 = arith.extui %21 : i1 to i32
    %c0_i32_16 = arith.constant 0 : i32
    %23 = arith.cmpi ne, %22, %c0_i32_16 : i32
    scf.if %23 {
      %c0_17 = arith.constant 0 : index
      %c0_18 = arith.constant 0 : index
      %24 = vector.load %arg5[%c0_17, %c0_18] : memref<8x1xf32, #tpu.memory_space<vmem>>, vector<8x1xf32>
      %c0_19 = arith.constant 0 : index
      %c0_20 = arith.constant 0 : index
      %25 = vector.load %arg6[%c0_19, %c0_20] : memref<8x1xf32, #tpu.memory_space<vmem>>, vector<8x1xf32>
      %cst_21 = arith.constant 5.000000e-01 : f32
      %26 = vector.broadcast %cst_21 : f32 to vector<8x1xf32>
      %27 = arith.mulf %25, %26 : vector<8x1xf32>
      %cst_22 = arith.constant 0.000000e+00 : f32
      %28 = vector.broadcast %cst_22 : f32 to vector<8x1xf32>
      %29 = arith.mulf %28, %24 : vector<8x1xf32>
      %30 = arith.addf %29, %27 : vector<8x1xf32>
      %cst_23 = arith.constant 9.99999997E-7 : f32
      %31 = vector.broadcast %cst_23 : f32 to vector<8x1xf32>
      %32 = arith.addf %30, %31 : vector<8x1xf32>
      %cst_24 = arith.constant 9.99999997E-7 : f32
      %33 = vector.broadcast %cst_24 : f32 to vector<8x1xf32>
      %34 = arith.addf %24, %33 : vector<8x1xf32>
      %35 = arith.divf %34, %32 : vector<8x1xf32>
      %c0_25 = arith.constant 0 : index
      %c0_26 = arith.constant 0 : index
      %36 = vector.load %arg4[%c0_25, %c0_26] : memref<8x1xf32, #tpu.memory_space<vmem>>, vector<8x1xf32>
      tpu.vector_store %arg4[%c0_25, %c0_26], %35 {strides = array<i32>} : memref<8x1xf32, #tpu.memory_space<vmem>>, vector<8x1xf32>,
    } else {
    }
    return
  }
  func.func @transform_0(%arg0: i32, %arg1: i32) -> (i32, i32) {
    %c0_i32 = arith.constant 0 : i32
    return %arg0, %arg1 : i32, i32
  }
  func.func @transform_1(%arg0: i32, %arg1: i32) -> (i32, i32) {
    %c0_i32 = arith.constant 0 : i32
    return %arg0, %arg1 : i32, i32
  }
  func.func @transform_2(%arg0: i32, %arg1: i32) -> (i32, i32) {
    %c0_i32 = arith.constant 0 : i32
    %c0_i32_0 = arith.constant 0 : i32
    return %arg0, %c0_i32 : i32, i32
  }
}

</mosaic_0001>

<llo_original>
// kernel: tpu_custom_call.1
$region0: #{tpu_custom_call.1}
  #allocation0 [shape = 'u32[]', space=smem, size = 0x4, offset = 0x4, fixed_abs, tag = 'smem constant byte address 0x4 - core index']
  #allocation1 [shape = 'u32[144,128]{1,0:T(1,128)}', space=vmem, size = 0x12000, scoped, tag = 'internal scratch']
  #allocation2 [shape = 'f32[8,1]{1,0:T(8,128)}', space=vmem, size = 0x1000, scoped, tag = 'scratch operand']
  #allocation3 [shape = 'f32[8,1]{1,0:T(8,128)}', space=vmem, size = 0x1000, scoped, tag = 'scratch operand']
  %s0 = inlined_call_operand.hbm [shape: f32[8,256], index: 0, kind: input, shape index: {}]
  %s1 = inlined_call_operand.hbm [shape: f32[8,256], index: 1, kind: input, shape index: {}]
  %s2 = inlined_call_operand.vmem [shape: f32[8,1], index: 2, kind: output, shape index: {}]
  %s3 = sld [smem:[#allocation0]]
  $region34: #{tpu_custom_call.1} parent=0
    _
  %s5 = ssub.s32 1, %s3
  %s6 = scalar_select 0, %s5, %s3
  $region1: #{tpu_custom_call.1} parent=0
    #allocation4 [shape = 'u8[8192]{0}', space=vmem, size = 0x2000, scoped, tag = 'input window, operand 0, single buffered']
    #allocation5 [shape = 's32[1]{0}', space=sflag, size = 0x4, scoped, tag = 'scoped memory for tpu_custom_call.1']
    #allocation6 [shape = 'u8[8192]{0}', space=vmem, size = 0x2000, scoped, tag = 'input window, operand 1, single buffered']
    #allocation7 [shape = 's32[1]{0}', space=sflag, size = 0x4, scoped, tag = 'scoped memory for tpu_custom_call.1']
    %7 = vsyncpa [#allocation5], 0
    %8 = vsyncpa [#allocation7], 0
    // Predicated region
    $region2: #{tpu_custom_call.1} parent=1 // pred_check
      _
    $region3: #{tpu_custom_call.1} parent=1 // pred_check_branch
      %10 = sbr.rel (0) target = $region5
    $region4: #{tpu_custom_call.1} parent=1 // pred_region
      %s12 = ssub.s32 256, 256
      %13 = vsyncadd [#allocation5], %s12
      %s15 = sshll.u32 [#allocation4], 4
      %s16 = int_to_ptr.vmem [resolvable:$true] %s15
      %18 = dma.hbm_to_vmem [thread:$0]  %s0, 256, %s16, [#allocation5]
    $region5: #{tpu_custom_call.1} parent=1 // pred_fallthru
      _
    // Predicated region
    $region6: #{tpu_custom_call.1} parent=1 // pred_check
      _
    $region7: #{tpu_custom_call.1} parent=1 // pred_check_branch
      %20 = sbr.rel (0) target = $region9
    $region8: #{tpu_custom_call.1} parent=1 // pred_region
      %s22 = ssub.s32 256, 256
      %23 = vsyncadd [#allocation7], %s22
      %s25 = sshll.u32 [#allocation6], 4
      %s26 = int_to_ptr.vmem [resolvable:$true] %s25
      %28 = dma.hbm_to_vmem [thread:$0]  %s1, 256, %s26, [#allocation7]
    $region9: #{tpu_custom_call.1} parent=1 // pred_fallthru
      _
    // Predicated region
    $region10: #{tpu_custom_call.1} parent=1 // pred_check
      _
    $region11: #{tpu_custom_call.1} parent=1 // pred_check_branch
      %30 = sbr.rel (0) target = $region13
    $region12: #{tpu_custom_call.1} parent=1 // pred_region
      %31 = dma.done [#allocation5], 256
    $region13: #{tpu_custom_call.1} parent=1 // pred_fallthru
      _
    // Predicated region
    $region14: #{tpu_custom_call.1} parent=1 // pred_check
      _
    $region15: #{tpu_custom_call.1} parent=1 // pred_check_branch
      %33 = sbr.rel (0) target = $region17
    $region16: #{tpu_custom_call.1} parent=1 // pred_region
      %34 = dma.done [#allocation7], 256
    $region17: #{tpu_custom_call.1} parent=1 // pred_fallthru
      _
    %p35 = scmp.eq.s32.totalorder 0, 0
    // Predicated region
    $region18: #{tpu_custom_call.1} parent=1 // pred_check
      %p36 = pneg %p35
    $region19: #{tpu_custom_call.1} parent=1 // pred_check_branch
      %38 = sbr.rel (%p36) target = $region21
    $region20: #{tpu_custom_call.1} parent=1 // pred_region
      %vm39 = vcmask 7168
      %40 = vst.msk [vmem:[#allocation2] sm:$0xff] %vm39, 0.0
      %41 = vst.msk [vmem:[#allocation3] sm:$0xff] %vm39, 0.0
    $region21: #{tpu_custom_call.1} parent=1 // pred_fallthru
      _
    %v42 = vld [vmem:[#allocation4] sm:$0xff]
    %v43 = vld [vmem:[#allocation4 + $0x8] sm:$0xff]
    %v44 = vld [vmem:[#allocation6] sm:$0xff]
    %v45 = vld [vmem:[#allocation6 + $0x8] sm:$0xff]
    %v46 = vmul.f32 %v42, %v44
    %v47 = vmul.f32 %v43, %v45
    %v48 = vadd.f32 %v46, %v47
    %49 = vadd.xlane.f32.xlu0 %v48
    %v50 = vpop.xlane.xlu0 %49
    %v51 = vadd.f32 %v50, 0.0
    %v52 = vadd.f32 %v42, %v44
    %v53 = vadd.f32 %v43, %v45
    %v54 = vadd.f32 %v52, %v53
    %55 = vadd.xlane.f32.xlu0 %v54
    %v56 = vpop.xlane.xlu0 %55
    %v57 = vadd.f32 %v56, 0.0
    %v58 = vld [vmem:[#allocation2] sm:$0xff]
    %v59 = vadd.f32 %v58, %v51
    %vm60 = vcmask 7168
    %61 = vst.msk [vmem:[#allocation2] sm:$0xff] %vm60, %v59
    %v62 = vld [vmem:[#allocation3] sm:$0xff]
    %v63 = vadd.f32 %v62, %v57
    %64 = vst.msk [vmem:[#allocation3] sm:$0xff] %vm60, %v63
    // Predicated region
    $region22: #{tpu_custom_call.1} parent=1 // pred_check
      %p65 = pneg %p35
    $region23: #{tpu_custom_call.1} parent=1 // pred_check_branch
      %67 = sbr.rel (%p65) target = $region25
    $region24: #{tpu_custom_call.1} parent=1 // pred_region
      %v68 = vld [vmem:[#allocation2] sm:$0xff]
      %v69 = vld [vmem:[#allocation3] sm:$0xff]
      %v70 = vmul.f32 %v69, 0.5
      %v71 = vmul.f32 %v68, 0.0
      %v72 = vadd.f32 %v71, %v70
      %v73 = vadd.f32 %v72, 1e-06
      %v74 = vadd.f32 %v68, 1e-06
      %v75 = vrcp.pop %v73
      %v76 = vmul.f32 %v74, %v75
      %77 = vst.msk [vmem:[%s2] sm:$0xff] %vm60, %v76
    $region25: #{tpu_custom_call.1} parent=1 // pred_fallthru
      _
    // Predicated region
    $region26: #{tpu_custom_call.1} parent=1 // pred_check
      _
    $region27: #{tpu_custom_call.1} parent=1 // pred_check_branch
      %79 = sbr.rel (0) target = $region29
    $region28: #{tpu_custom_call.1} parent=1 // pred_region
      _
    $region29: #{tpu_custom_call.1} parent=1 // pred_fallthru
      _
    // Predicated region
    $region30: #{tpu_custom_call.1} parent=1 // pred_check
      _
    $region31: #{tpu_custom_call.1} parent=1 // pred_check_branch
      %81 = sbr.rel (0) target = $region33
    $region32: #{tpu_custom_call.1} parent=1 // pred_region
      _
    $region33: #{tpu_custom_call.1} parent=1 // pred_fallthru
      _
    %82 = vsyncpa [#allocation5], 1
    %83 = vsyncpa [#allocation7], 1

</llo_original>
